<compile_context>
chip_gen: v7x
topology: tpu7x:2x2x1
jax: 0.10.0
libtpu: 0.0.40
codegen_flags: <defaults>
</compile_context>

<pallas_src>
import jax
import jax.numpy as jnp
from jax.experimental import pallas as pl
from jax.experimental.pallas import tpu as pltpu

_LANES = 128
_SUBLANES = 8
# 8192 rows * 128 lanes * 4 B = 4 MiB per f32 input tile; 2 inputs x 2 buffers
# = 16 MiB of VMEM, well under the 32 MiB scoped limit on every generation.
_DEFAULT_BLOCK_ROWS = 8192


def _ceil_div(a, b):
    return -(-a // b)


def _round_up(a, b):
    return _ceil_div(a, b) * b


def _oriclass_loss_kernel(x_ref, t_ref, out_ref):
    """grid = (num_chunks, steps_per_chunk).

    Axis 0 is 'parallel' (megacore sharding on v7x); axis 1 is the reduction
    ('arbitrary').  The output block index is constant along axis 1, so the
    tiny (8, 128) output stays resident in VMEM and acts as the accumulator —
    it is written back to HBM exactly once per chunk.
    """
    j = pl.program_id(1)

    @pl.when(j == 0)
    def _():
        out_ref[...] = jnp.zeros_like(out_ref)

    x = x_ref[...].astype(jnp.float32)
    t = t_ref[...].astype(jnp.float32)
    # Pure elementwise VPU work + EUP log (no MXU, no cross-lane shuffles).
    contrib = -(t * jnp.log(x))
    # Fold (block_rows, 128) -> (8, 128): grouping rows in blocks of 8 matches
    # the native f32 (8, 128) vreg tiling, so the axis-0 sum is just vreg-wise
    # VPU adds — the same add count as a full-size accumulator, but the
    # resident/written output shrinks from block_rows*128 to 8*128 floats.
    out_ref[...] += contrib.reshape(-1, _SUBLANES, _LANES).sum(axis=0)


def oriclass_loss(inputs, targets, *, reduction="mean", block_rows=None):
    """Pallas TPU implementation of ORICLASSLoss.forward.

    inputs, targets: (B, C) float arrays (inputs are probabilities > 0).
    Returns a scalar float32: mean or sum over batch of per-sample NLL.
    """
    if reduction not in ("mean", "sum"):
        raise ValueError("reduction must be mean or sum")
    B, C = inputs.shape
    assert targets.shape == (B, C)

    n = B * C
    rows = _ceil_div(n, _LANES)
    rows8 = _round_up(rows, _SUBLANES)

    if block_rows is None:
        block_rows = _DEFAULT_BLOCK_ROWS
    block_rows = max(_SUBLANES, _round_up(block_rows, _SUBLANES))

    # Two chunks (one per v7x TensorCore) when there is enough work; on
    # single-core chips the extra grid point is negligible.
    num_chunks = 2 if rows8 >= 2 * _SUBLANES else 1
    rows_per_chunk = _round_up(_ceil_div(rows8, num_chunks), _SUBLANES)
    block_rows = min(block_rows, rows_per_chunk)
    steps_per_chunk = _ceil_div(rows_per_chunk, block_rows)
    # Re-balance so the last tile is not mostly padding (bounds padded HBM
    # traffic to < num_chunks * 2 * 8 rows).
    block_rows = _round_up(_ceil_div(rows_per_chunk, steps_per_chunk), _SUBLANES)
    padded_rows = num_chunks * steps_per_chunk * block_rows
    padded_n = padded_rows * _LANES

    # Lane-dense re-layout: flatten and (if needed) pad so every vreg uses all
    # 128 lanes.  Pad with x=1 (log 1 = 0) and t=0 => zero contribution, so no
    # in-kernel masking is required.
    x = inputs.reshape(-1)
    t = targets.reshape(-1)
    pad = padded_n - n
    if pad:
        x = jnp.pad(x, (0, pad), constant_values=1.0)
        t = jnp.pad(t, (0, pad), constant_values=0.0)
    x = x.reshape(padded_rows, _LANES)
    t = t.reshape(padded_rows, _LANES)

    grid = (num_chunks, steps_per_chunk)
    out_rows = num_chunks * _SUBLANES

    in_bytes = padded_n * (
        jnp.dtype(inputs.dtype).itemsize + jnp.dtype(targets.dtype).itemsize
    )
    cost = pl.CostEstimate(
        flops=2 * padded_n,
        transcendentals=padded_n,
        bytes_accessed=in_bytes + out_rows * _LANES * 4,
    )

    partials = pl.pallas_call(
        _oriclass_loss_kernel,
        out_shape=jax.ShapeDtypeStruct((out_rows, _LANES), jnp.float32),
        grid_spec=pltpu.PrefetchScalarGridSpec(
            num_scalar_prefetch=0,
            grid=grid,
            in_specs=[
                pl.BlockSpec(
                    (block_rows, _LANES),
                    lambda i, j: (i * steps_per_chunk + j, 0),
                ),
                pl.BlockSpec(
                    (block_rows, _LANES),
                    lambda i, j: (i * steps_per_chunk + j, 0),
                ),
            ],
            out_specs=pl.BlockSpec((_SUBLANES, _LANES), lambda i, j: (i, 0)),
        ),
        compiler_params=pltpu.CompilerParams(
            dimension_semantics=("parallel", "arbitrary"),
            vmem_limit_bytes=32 * 1024 * 1024,
        ),
        cost_estimate=cost,
    )(x, t)

    total = jnp.sum(partials)  # tiny (num_chunks*8*128 elems) reduce in XLA
    loss = total / jnp.float32(B) if reduction == "mean" else total
    # TODO(synk): PyTorch raises ValueError when the loss is NaN; raising from a
    # TPU kernel is not expressible — callers may check jnp.isnan(loss) host-side.
    return loss


def _reference(inputs, targets, reduction="mean"):
    per_sample = jnp.sum(-(targets * jnp.log(inputs)), axis=1)
    return jnp.mean(per_sample) if reduction == "mean" else jnp.sum(per_sample)


if __name__ == "__main__":
    key = jax.random.PRNGKey(0)
    k1, k2, k3, k4, k5, k6 = jax.random.split(key, 6)

    # Primary demo: small shapes consistent with the module (batch=8, classes=32).
    B, C = 8, 32
    inputs = jax.nn.softmax(jax.random.normal(k1, (B, C), jnp.float32), axis=1)
    targets = jax.nn.softmax(jax.random.normal(k2, (B, C), jnp.float32), axis=1)

    loss = jax.block_until_ready(oriclass_loss(inputs, targets, reduction="mean"))
    ref = _reference(inputs, targets, "mean")
    assert not bool(jnp.isnan(loss)), "Error while computing orientation Loss"
    assert jnp.allclose(loss, ref, rtol=1e-5, atol=1e-6), (loss, ref)

    loss_sum = jax.block_until_ready(oriclass_loss(inputs, targets, reduction="sum"))
    ref_sum = _reference(inputs, targets, "sum")
    assert jnp.allclose(loss_sum, ref_sum, rtol=1e-5, atol=1e-5), (loss_sum, ref_sum)

    # Exercise the multi-chunk (parallel axis) / multi-step pipelined path.
    B2, C2 = 128, 128
    x2 = jax.nn.softmax(jax.random.normal(k3, (B2, C2), jnp.float32), axis=1)
    t2 = jax.nn.softmax(jax.random.normal(k4, (B2, C2), jnp.float32), axis=1)
    l2 = jax.block_until_ready(oriclass_loss(x2, t2, reduction="mean", block_rows=8))
    r2 = _reference(x2, t2, "mean")
    assert jnp.allclose(l2, r2, rtol=1e-5, atol=1e-6), (l2, r2)

    # Non-aligned shape exercises the padded-tail path.
    B3, C3 = 5, 37
    x3 = jax.nn.softmax(jax.random.normal(k5, (B3, C3), jnp.float32), axis=1)
    t3 = jax.nn.softmax(jax.random.normal(k6, (B3, C3), jnp.float32), axis=1)
    l3 = jax.block_until_ready(oriclass_loss(x3, t3, reduction="sum"))
    r3 = _reference(x3, t3, "sum")
    assert jnp.allclose(l3, r3, rtol=1e-5, atol=1e-5), (l3, r3)

    print("KERNEL_OK")
</pallas_src>

<mosaic_0001>
module attributes {stable_mosaic.version = 11 : i64} {
  func.func @_oriclass_loss_kernel(%arg0: i32, %arg1: i32, %arg2: memref<8x128xf32, #tpu.memory_space<vmem>>, %arg3: memref<8x128xf32, #tpu.memory_space<vmem>>, %arg4: memref<8x128xf32, #tpu.memory_space<vmem>>) attributes {dimension_semantics = [#tpu.dimension_semantics<parallel>, #tpu.dimension_semantics<arbitrary>], iteration_bounds = array<i64: 1, 1>, scalar_prefetch = 0 : i64, scratch_operands = 0 : i64, tpu.core_type = #tpu.core_type<tc>, window_params = [{transform_indices = @transform_0, window_bounds = array<i64: 8, 128>}, {transform_indices = @transform_1, window_bounds = array<i64: 8, 128>}, {transform_indices = @transform_2, window_bounds = array<i64: 8, 128>}]} {
    %c0_i32 = arith.constant 0 : i32
    %0 = arith.cmpi eq, %arg1, %c0_i32 : i32
    %1 = arith.extui %0 : i1 to i32
    %c0_i32_0 = arith.constant 0 : i32
    %2 = arith.cmpi ne, %1, %c0_i32_0 : i32
    scf.if %2 {
      %cst_9 = arith.constant 0.000000e+00 : f32
      %14 = vector.broadcast %cst_9 : f32 to vector<8x128xf32>
      %c0_10 = arith.constant 0 : index
      %c0_11 = arith.constant 0 : index
      %15 = vector.load %arg4[%c0_10, %c0_11] : memref<8x128xf32, #tpu.memory_space<vmem>>, vector<8x128xf32>
      tpu.vector_store %arg4[%c0_10, %c0_11], %14 {strides = array<i32>} : memref<8x128xf32, #tpu.memory_space<vmem>>, vector<8x128xf32>,
    } else {
    }
    %c0 = arith.constant 0 : index
    %c0_1 = arith.constant 0 : index
    %3 = vector.load %arg2[%c0, %c0_1] : memref<8x128xf32, #tpu.memory_space<vmem>>, vector<8x128xf32>
    %c0_2 = arith.constant 0 : index
    %c0_3 = arith.constant 0 : index
    %4 = vector.load %arg3[%c0_2, %c0_3] : memref<8x128xf32, #tpu.memory_space<vmem>>, vector<8x128xf32>
    %5 = math.log %3 : vector<8x128xf32>
    %6 = arith.mulf %4, %5 : vector<8x128xf32>
    %cst = arith.constant 0.000000e+00 : f32
    %7 = vector.broadcast %cst : f32 to vector<8x128xf32>
    %8 = arith.subf %7, %6 : vector<8x128xf32>
    %c0_4 = arith.constant 0 : index
    %c0_5 = arith.constant 0 : index
    %9 = vector.load %arg4[%c0_4, %c0_5] : memref<8x128xf32, #tpu.memory_space<vmem>>, vector<8x128xf32>
    %10 = vector.shape_cast %8 : vector<8x128xf32> to vector<1x8x128xf32>
    %cst_6 = arith.constant dense<0.000000e+00> : vector<8x128xf32>
    %11 = vector.multi_reduction <add>, %10, %cst_6 [0] : vector<1x8x128xf32> to vector<8x128xf32>
    %12 = arith.addf %9, %11 : vector<8x128xf32>
    %c0_7 = arith.constant 0 : index
    %c0_8 = arith.constant 0 : index
    %13 = vector.load %arg4[%c0_7, %c0_8] : memref<8x128xf32, #tpu.memory_space<vmem>>, vector<8x128xf32>
    tpu.vector_store %arg4[%c0_7, %c0_8], %12 {strides = array<i32>} : memref<8x128xf32, #tpu.memory_space<vmem>>, vector<8x128xf32>,
    return
  }
  func.func @transform_0(%arg0: i32, %arg1: i32) -> (i32, i32) {
    %c1_i32 = arith.constant 1 : i32
    %0 = arith.muli %arg0, %c1_i32 : i32
    %1 = arith.addi %0, %arg1 : i32
    %c0_i32 = arith.constant 0 : i32
    %c0_i32_0 = arith.constant 0 : i32
    return %1, %c0_i32 : i32, i32
  }
  func.func @transform_1(%arg0: i32, %arg1: i32) -> (i32, i32) {
    %c1_i32 = arith.constant 1 : i32
    %0 = arith.muli %arg0, %c1_i32 : i32
    %1 = arith.addi %0, %arg1 : i32
    %c0_i32 = arith.constant 0 : i32
    %c0_i32_0 = arith.constant 0 : i32
    return %1, %c0_i32 : i32, i32
  }
  func.func @transform_2(%arg0: i32, %arg1: i32) -> (i32, i32) {
    %c0_i32 = arith.constant 0 : i32
    %c0_i32_0 = arith.constant 0 : i32
    return %arg0, %c0_i32 : i32, i32
  }
}

</mosaic_0001>

<llo_original>
// kernel: tpu_custom_call.1
$region0: #{tpu_custom_call.1}
  #allocation0 [shape = 'u32[]', space=smem, size = 0x4, offset = 0x4, fixed_abs, tag = 'smem constant byte address 0x4 - core index']
  #allocation1 [shape = 'u32[144,128]{1,0:T(1,128)}', space=vmem, size = 0x12000, scoped, tag = 'internal scratch']
  %s0 = inlined_call_operand.hbm [shape: f32[8,128], index: 0, kind: input, shape index: {}]
  %s1 = inlined_call_operand.hbm [shape: f32[8,128], index: 1, kind: input, shape index: {}]
  %s2 = inlined_call_operand.hbm [shape: f32[8,128], index: 2, kind: output, shape index: {}]
  %s3 = sld [smem:[#allocation0]]
  $region30: #{tpu_custom_call.1} parent=0
    _
  %s5 = ssub.s32 1, %s3
  %s6 = scalar_select 0, %s5, %s3
  $region1: #{tpu_custom_call.1} parent=0
    #allocation2 [shape = 'u8[4096]{0}', space=vmem, size = 0x1000, scoped, tag = 'input window, operand 0, single buffered']
    #allocation3 [shape = 's32[1]{0}', space=sflag, size = 0x4, scoped, tag = 'scoped memory for tpu_custom_call.1']
    #allocation4 [shape = 's32[1]{0}', space=sflag, size = 0x4, scoped, tag = 'scoped memory for tpu_custom_call.1']
    #allocation5 [shape = 'u8[4096]{0}', space=vmem, size = 0x1000, scoped, tag = 'input window, operand 1, single buffered']
    #allocation6 [shape = 's32[1]{0}', space=sflag, size = 0x4, scoped, tag = 'scoped memory for tpu_custom_call.1']
    #allocation7 [shape = 'u8[4096]{0}', space=vmem, size = 0x1000, scoped, tag = 'output window, operand 0, single buffered']
    %7 = vsyncpa [#allocation3], 0
    %8 = vsyncpa [#allocation6], 0
    %9 = vsyncpa [#allocation4], 0
    // Predicated region
    $region2: #{tpu_custom_call.1} parent=1 // pred_check
      _
    $region3: #{tpu_custom_call.1} parent=1 // pred_check_branch
      %11 = sbr.rel (0) target = $region5
    $region4: #{tpu_custom_call.1} parent=1 // pred_region
      %s12 = sadd.s32 0, 0
      %s14 = ssub.s32 128, 128
      %15 = vsyncadd [#allocation3], %s14
      %s16 = smul.addr %s12, 128
      %s17 = scalar_lea.hbm %s0, %s16
      %s19 = sshll.u32 [#allocation2], 4
      %s20 = int_to_ptr.vmem [resolvable:$true] %s19
      %22 = dma.hbm_to_vmem [thread:$0]  %s17, 128, %s20, [#allocation3]
    $region5: #{tpu_custom_call.1} parent=1 // pred_fallthru
      _
    // Predicated region
    $region6: #{tpu_custom_call.1} parent=1 // pred_check
      _
    $region7: #{tpu_custom_call.1} parent=1 // pred_check_branch
      %24 = sbr.rel (0) target = $region9
    $region8: #{tpu_custom_call.1} parent=1 // pred_region
      %s25 = sadd.s32 0, 0
      %s27 = ssub.s32 128, 128
      %28 = vsyncadd [#allocation6], %s27
      %s29 = smul.addr %s25, 128
      %s30 = scalar_lea.hbm %s1, %s29
      %s32 = sshll.u32 [#allocation5], 4
      %s33 = int_to_ptr.vmem [resolvable:$true] %s32
      %35 = dma.hbm_to_vmem [thread:$0]  %s30, 128, %s33, [#allocation6]
    $region9: #{tpu_custom_call.1} parent=1 // pred_fallthru
      _
    // Predicated region
    $region10: #{tpu_custom_call.1} parent=1 // pred_check
      _
    $region11: #{tpu_custom_call.1} parent=1 // pred_check_branch
      %37 = sbr.rel (0) target = $region13
    $region12: #{tpu_custom_call.1} parent=1 // pred_region
      %38 = dma.done [#allocation3], 128
    $region13: #{tpu_custom_call.1} parent=1 // pred_fallthru
      _
    // Predicated region
    $region14: #{tpu_custom_call.1} parent=1 // pred_check
      _
    $region15: #{tpu_custom_call.1} parent=1 // pred_check_branch
      %40 = sbr.rel (0) target = $region17
    $region16: #{tpu_custom_call.1} parent=1 // pred_region
      %41 = dma.done [#allocation6], 128
    $region17: #{tpu_custom_call.1} parent=1 // pred_fallthru
      _
    %s42 = sadd.s32 0, 0
    %s43 = sadd.s32 0, 0
    %p44 = scmp.eq.s32.totalorder 0, 0
    // Predicated region
    $region18: #{tpu_custom_call.1} parent=1 // pred_check
      %p45 = pneg %p44
    $region19: #{tpu_custom_call.1} parent=1 // pred_check_branch
      %47 = sbr.rel (%p45) target = $region21
    $region20: #{tpu_custom_call.1} parent=1 // pred_region
      %48 = vst [vmem:[#allocation7] sm:$0xff] 0.0
    $region21: #{tpu_custom_call.1} parent=1 // pred_fallthru
      _
    %v49 = vld [vmem:[#allocation2] sm:$0xff]
    %v50 = vld [vmem:[#allocation5] sm:$0xff]
    %v51 = vlog2.pop %v49
    %v52 = vmul.f32 %v51, 0.6931472
    %v53 = vmul.f32 %v50, %v52
    %v54 = vsub.f32 0.0, %v53
    %v55 = vld [vmem:[#allocation7] sm:$0xff]
    %v56 = vadd.f32 %v54, 0.0
    %v57 = vadd.f32 %v55, %v56
    %58 = vst [vmem:[#allocation7] sm:$0xff] %v57
    // Predicated region
    $region22: #{tpu_custom_call.1} parent=1 // pred_check
      _
    $region23: #{tpu_custom_call.1} parent=1 // pred_check_branch
      %60 = sbr.rel (0) target = $region25
    $region24: #{tpu_custom_call.1} parent=1 // pred_region
      %s62 = ssub.s32 128, 128
      %63 = vsyncadd [#allocation4], %s62
      %s65 = sshll.u32 [#allocation7], 4
      %s66 = int_to_ptr.vmem [resolvable:$true] %s65
      %68 = dma.vmem_to_hbm [thread:$0]  %s66, 128, %s2, [#allocation4]
    $region25: #{tpu_custom_call.1} parent=1 // pred_fallthru
      _
    // Predicated region
    $region26: #{tpu_custom_call.1} parent=1 // pred_check
      _
    $region27: #{tpu_custom_call.1} parent=1 // pred_check_branch
      %70 = sbr.rel (0) target = $region29
    $region28: #{tpu_custom_call.1} parent=1 // pred_region
      %71 = dma.done [#allocation4], 128
    $region29: #{tpu_custom_call.1} parent=1 // pred_fallthru
      _
    %72 = vsyncpa [#allocation3], 1
    %73 = vsyncpa [#allocation6], 1
    %74 = vsyncpa [#allocation4], 1

</llo_original>
